<compile_context>
chip_gen: v6e
topology: v6e:2x2x1
jax: 0.10.0
libtpu: 0.0.40
codegen_flags: <defaults>
</compile_context>

<pallas_src>
import jax
import jax.numpy as jnp
from jax.experimental import pallas as pl
from jax.experimental.pallas import tpu as pltpu

EPS = 1e-6
_TARGET_BLOCK_BYTES = 2 * 1024 * 1024    # per-step input block target (~2 MB)
_VMEM_LIMIT_BYTES = 32 * 1024 * 1024     # safe scoped-VMEM limit on v5e/v6e/v7x


def _divisor_tile(dim: int, align: int, limit: int):
    """Largest divisor of `dim` that is a multiple of `align` and <= `limit`."""
    best = None
    for d in range(align, dim + 1, align):
        if dim % d == 0 and d <= limit:
            best = d
    return best


def _choose_tiles(N, C, HW, itemsize, target_bytes):
    """Pick (b_tile, c_tile, hw_tile) for blocks of x viewed as (N, C, HW)."""
    # Lane axis (HW): tile only when 128-aligned; otherwise use the full-dim
    # exemption from the (8, 128) rule.
    c_min = 128 if C % 128 == 0 else C
    if HW % 128 == 0:
        hw_limit = max(128, target_bytes // (itemsize * c_min))
        hw_tile = _divisor_tile(HW, 128, hw_limit) or 128
    else:
        # TODO(synk): pad+mask HW for very large spatial maps that are not a
        # multiple of 128 (the block then spans the full HW extent).
        hw_tile = HW

    # Sublane axis (C): multiples of 128 keep the (N, C) output store
    # lane-dense and legal; small / odd C uses the full-dim exemption.
    if C % 128 == 0:
        c_limit = max(128, target_bytes // (itemsize * hw_tile))
        c_tile = _divisor_tile(C, 128, c_limit) or 128
    else:
        c_tile = C

    # Batch folding: grow the leading block dim toward ~target_bytes/step, but
    # keep >= 2 parallel grid steps (megacore / 2 TCs on v7x) when the problem
    # is large enough for that to matter.
    n_c_blocks = C // c_tile
    big = N * C * HW * itemsize > 4 * target_bytes
    b_limit = max(1, target_bytes // (itemsize * c_tile * hw_tile))
    b_tile = 1
    for d in range(1, N + 1):
        if N % d != 0 or d > b_limit:
            continue
        if big and N * n_c_blocks >= 2 and (N // d) * n_c_blocks < 2:
            continue
        b_tile = d
    return b_tile, c_tile, hw_tile


def _make_int_p_kernel(p_int: int, inv_hw: float, eps: float):
    """Fast path: static integer p -> VPU multiply chain + f32 accumulation."""
    inv_p = 1.0 / float(p_int)

    def kernel(x_ref, o_ref, acc_ref):
        h = pl.program_id(2)

        @pl.when(h == 0)
        def _init():
            acc_ref[...] = jnp.zeros_like(acc_ref)

        x = x_ref[...]                       # (b, c, hw) in the input dtype
        x = jnp.maximum(x, eps)              # clamp(min=eps)
        xp = x
        for _ in range(p_int - 1):           # x**p on the VPU (bf16 stays bf16)
            xp = xp * x
        acc_ref[...] += jnp.sum(xp.astype(jnp.float32), axis=-1)

        @pl.when(h == pl.num_programs(2) - 1)
        def _finalize():
            m = acc_ref[...] * inv_hw        # mean over the full spatial extent
            out = m if p_int == 1 else jnp.exp(jnp.log(m) * inv_p)
            o_ref[...] = out.astype(o_ref.dtype)

    return kernel


def _make_general_kernel(inv_hw: float, eps: float):
    """General path: runtime / non-integer p via exp(p * log(x)) (scalar prefetch)."""

    def kernel(p_ref, x_ref, o_ref, acc_ref):
        h = pl.program_id(2)

        @pl.when(h == 0)
        def _init():
            acc_ref[...] = jnp.zeros_like(acc_ref)

        p = p_ref[0]
        x = jnp.maximum(x_ref[...].astype(jnp.float32), eps)
        xp = jnp.exp(p * jnp.log(x))         # x**p (x > 0 after the clamp)
        acc_ref[...] += jnp.sum(xp, axis=-1)

        @pl.when(h == pl.num_programs(2) - 1)
        def _finalize():
            m = acc_ref[...] * inv_hw
            o_ref[...] = jnp.exp(jnp.log(m) / p).astype(o_ref.dtype)

    return kernel


def gem_pool(x: jax.Array, p=3.0, eps: float = EPS,
             block_bytes: int = _TARGET_BLOCK_BYTES) -> jax.Array:
    """GeM pooling forward. x: (N, C, H, W) -> (N, C, 1, 1)."""
    N, C, H, W = x.shape
    HW = H * W
    x3 = x.reshape(N, C, HW)   # free: merges contiguous trailing dims

    itemsize = jnp.dtype(x.dtype).itemsize
    b_tile, c_tile, hw_tile = _choose_tiles(N, C, HW, itemsize, block_bytes)
    grid = (N // b_tile, C // c_tile, HW // hw_tile)
    inv_hw = 1.0 / float(HW)

    compiler_params = pltpu.CompilerParams(
        dimension_semantics=("parallel", "parallel", "arbitrary"),
        vmem_limit_bytes=_VMEM_LIMIT_BYTES,
    )
    out_shape = jax.ShapeDtypeStruct((N, C), x.dtype)
    scratch_shapes = [pltpu.VMEM((b_tile, c_tile), jnp.float32)]

    # Static p (python number / concrete array) -> integer fast path when
    # applicable; traced p (learnable parameter) -> scalar-prefetch path.
    try:
        static_p = float(p)
    except (TypeError, jax.errors.ConcretizationTypeError):
        static_p = None

    use_int_path = (
        static_p is not None
        and static_p == round(static_p)
        and 1 <= round(static_p) <= 8
    )

    if use_int_path:
        kernel = _make_int_p_kernel(int(round(static_p)), inv_hw, eps)
        out2d = pl.pallas_call(
            kernel,
            out_shape=out_shape,
            grid_spec=pltpu.PrefetchScalarGridSpec(
                num_scalar_prefetch=0,
                grid=grid,
                in_specs=[pl.BlockSpec((b_tile, c_tile, hw_tile),
                                       lambda n, c, h: (n, c, h))],
                out_specs=pl.BlockSpec((b_tile, c_tile),
                                       lambda n, c, h: (n, c)),
                scratch_shapes=scratch_shapes,
            ),
            compiler_params=compiler_params,
        )(x3)
    else:
        p_arr = jnp.asarray(p, dtype=jnp.float32).reshape(1)
        kernel = _make_general_kernel(inv_hw, eps)
        out2d = pl.pallas_call(
            kernel,
            out_shape=out_shape,
            grid_spec=pltpu.PrefetchScalarGridSpec(
                num_scalar_prefetch=1,
                grid=grid,
                in_specs=[pl.BlockSpec((b_tile, c_tile, hw_tile),
                                       lambda n, c, h, p_ref: (n, c, h))],
                out_specs=pl.BlockSpec((b_tile, c_tile),
                                       lambda n, c, h, p_ref: (n, c)),
                scratch_shapes=scratch_shapes,
            ),
            compiler_params=compiler_params,
        )(p_arr, x3)

    return out2d.reshape(N, C, 1, 1)


def _reference_gem(x, p=3.0, eps=EPS):
    """Pure-JAX reference mirroring the PyTorch forward."""
    xp = jnp.maximum(x, eps) ** p
    pooled = jnp.mean(xp, axis=(-2, -1), keepdims=True)
    return pooled ** (1.0 / p)


if __name__ == "__main__":
    key = jax.random.PRNGKey(0)

    # Small shapes consistent with the module: N=2, C=4, H=W=16.
    N, C, H, W = 2, 4, 16, 16
    x = jax.random.normal(key, (N, C, H, W), dtype=jnp.float32)

    # Default GeMP: p = 3.0 (static integer fast path, single block).
    y = gem_pool(x, p=3.0)
    jax.block_until_ready(y)
    y_ref = _reference_gem(x, p=3.0)
    assert y.shape == (N, C, 1, 1), y.shape
    assert jnp.allclose(y, y_ref, atol=1e-5, rtol=1e-5), (
        float(jnp.max(jnp.abs(y - y_ref)))
    )

    # Non-integer p (scalar-prefetch general path).
    y2 = gem_pool(x, p=2.5)
    jax.block_until_ready(y2)
    y2_ref = _reference_gem(x, p=2.5)
    assert jnp.allclose(y2, y2_ref, atol=1e-5, rtol=1e-5), (
        float(jnp.max(jnp.abs(y2 - y2_ref)))
    )

    # Larger map with a tiny block budget to exercise C/HW tiling, batch
    # folding and the HW accumulator (init/finalize) path: grid = (2, 2, 8).
    x_big = jax.random.normal(jax.random.PRNGKey(1), (2, 256, 32, 32),
                              dtype=jnp.float32)
    y3 = gem_pool(x_big, p=3.0, block_bytes=64 * 1024)
    jax.block_until_ready(y3)
    y3_ref = _reference_gem(x_big, p=3.0)
    assert jnp.allclose(y3, y3_ref, atol=1e-4, rtol=1e-4), (
        float(jnp.max(jnp.abs(y3 - y3_ref)))
    )

    print("KERNEL_OK")
</pallas_src>

<mosaic_0001>
module attributes {stable_mosaic.version = 11 : i64} {
  func.func @kernel(%arg0: i32, %arg1: i32, %arg2: i32, %arg3: memref<2x4x256xf32, #tpu.memory_space<vmem>>, %arg4: memref<2x4xf32, #tpu.memory_space<vmem>>, %arg5: memref<2x4xf32, #tpu.memory_space<vmem>>) attributes {dimension_semantics = [#tpu.dimension_semantics<parallel>, #tpu.dimension_semantics<parallel>, #tpu.dimension_semantics<arbitrary>], iteration_bounds = array<i64: 1, 1, 1>, scalar_prefetch = 0 : i64, scratch_operands = 1 : i64, tpu.core_type = #tpu.core_type<tc>, window_params = [{transform_indices = @transform_0, window_bounds = array<i64: 2, 4, 256>}, {transform_indices = @transform_1, window_bounds = array<i64: 2, 4>}]} {
    %c0_i32 = arith.constant 0 : i32
    %0 = arith.cmpi eq, %arg2, %c0_i32 : i32
    %1 = arith.extui %0 : i1 to i32
    %c0_i32_0 = arith.constant 0 : i32
    %2 = arith.cmpi ne, %1, %c0_i32_0 : i32
    scf.if %2 {
      %cst_10 = arith.constant 0.000000e+00 : f32
      %15 = vector.broadcast %cst_10 : f32 to vector<2x4xf32>
      %c0_11 = arith.constant 0 : index
      %c0_12 = arith.constant 0 : index
      %16 = vector.load %arg5[%c0_11, %c0_12] : memref<2x4xf32, #tpu.memory_space<vmem>>, vector<2x4xf32>
      tpu.vector_store %arg5[%c0_11, %c0_12], %15 {strides = array<i32>} : memref<2x4xf32, #tpu.memory_space<vmem>>, vector<2x4xf32>,
    } else {
    }
    %c0 = arith.constant 0 : index
    %c0_1 = arith.constant 0 : index
    %c0_2 = arith.constant 0 : index
    %3 = vector.load %arg3[%c0, %c0_1, %c0_2] : memref<2x4x256xf32, #tpu.memory_space<vmem>>, vector<2x4x256xf32>
    %cst = arith.constant 9.99999997E-7 : f32
    %4 = vector.broadcast %cst : f32 to vector<2x4x256xf32>
    %5 = arith.maximumf %3, %4 : vector<2x4x256xf32>
    %6 = arith.mulf %5, %5 : vector<2x4x256xf32>
    %7 = arith.mulf %6, %5 : vector<2x4x256xf32>
    %c0_3 = arith.constant 0 : index
    %c0_4 = arith.constant 0 : index
    %8 = vector.load %arg5[%c0_3, %c0_4] : memref<2x4xf32, #tpu.memory_space<vmem>>, vector<2x4xf32>
    %cst_5 = arith.constant dense<0.000000e+00> : vector<2x4xf32>
    %9 = vector.multi_reduction <add>, %7, %cst_5 [2] : vector<2x4x256xf32> to vector<2x4xf32>
    %10 = arith.addf %8, %9 : vector<2x4xf32>
    %c0_6 = arith.constant 0 : index
    %c0_7 = arith.constant 0 : index
    %11 = vector.load %arg5[%c0_6, %c0_7] : memref<2x4xf32, #tpu.memory_space<vmem>>, vector<2x4xf32>
    tpu.vector_store %arg5[%c0_6, %c0_7], %10 {strides = array<i32>} : memref<2x4xf32, #tpu.memory_space<vmem>>, vector<2x4xf32>,
    %c0_i32_8 = arith.constant 0 : i32
    %12 = arith.cmpi eq, %arg2, %c0_i32_8 : i32
    %13 = arith.extui %12 : i1 to i32
    %c0_i32_9 = arith.constant 0 : i32
    %14 = arith.cmpi ne, %13, %c0_i32_9 : i32
    scf.if %14 {
      %c0_10 = arith.constant 0 : index
      %c0_11 = arith.constant 0 : index
      %15 = vector.load %arg5[%c0_10, %c0_11] : memref<2x4xf32, #tpu.memory_space<vmem>>, vector<2x4xf32>
      %cst_12 = arith.constant 3.906250e-03 : f32
      %16 = vector.broadcast %cst_12 : f32 to vector<2x4xf32>
      %17 = arith.mulf %15, %16 : vector<2x4xf32>
      %18 = math.log %17 : vector<2x4xf32>
      %cst_13 = arith.constant 0.333333343 : f32
      %19 = vector.broadcast %cst_13 : f32 to vector<2x4xf32>
      %20 = arith.mulf %18, %19 : vector<2x4xf32>
      %21 = math.exp %20 : vector<2x4xf32>
      %c0_14 = arith.constant 0 : index
      %c0_15 = arith.constant 0 : index
      %22 = vector.load %arg4[%c0_14, %c0_15] : memref<2x4xf32, #tpu.memory_space<vmem>>, vector<2x4xf32>
      tpu.vector_store %arg4[%c0_14, %c0_15], %21 {strides = array<i32>} : memref<2x4xf32, #tpu.memory_space<vmem>>, vector<2x4xf32>,
    } else {
    }
    return
  }
  func.func @transform_0(%arg0: i32, %arg1: i32, %arg2: i32) -> (i32, i32, i32) {
    %c0_i32 = arith.constant 0 : i32
    return %arg0, %arg1, %arg2 : i32, i32, i32
  }
  func.func @transform_1(%arg0: i32, %arg1: i32, %arg2: i32) -> (i32, i32) {
    %c0_i32 = arith.constant 0 : i32
    return %arg0, %arg1 : i32, i32
  }
}

</mosaic_0001>

<llo_original>
// kernel: tpu_custom_call.1
$region0: #{tpu_custom_call.1}
  #allocation0 [shape = 'u32[]', space=smem, size = 0x4, offset = 0x4, fixed_abs, tag = 'smem constant byte address 0x4 - core index']
  #allocation1 [shape = 'u32[144,128]{1,0:T(1,128)}', space=vmem, size = 0x12000, scoped, tag = 'internal scratch']
  #allocation2 [shape = 'f32[2,4]{1,0:T(2,128)}', space=vmem, size = 0x400, scoped, tag = 'scratch operand']
  %s0 = inlined_call_operand.hbm [shape: f32[2,4,256], index: 0, kind: input, shape index: {}]
  %s1 = inlined_call_operand.hbm [shape: f32[2,4], index: 1, kind: output, shape index: {}]
  %s2 = sld [smem:[#allocation0]]
  $region26: #{tpu_custom_call.1} parent=0
    _
  %s4 = ssub.s32 1, %s2
  %s5 = scalar_select 0, %s4, %s2
  $region1: #{tpu_custom_call.1} parent=0
    #allocation3 [shape = 'u8[8192]{0}', space=vmem, size = 0x2000, scoped, tag = 'input window, operand 0, single buffered']
    #allocation4 [shape = 's32[1]{0}', space=sflag, size = 0x4, scoped, tag = 'scoped memory for tpu_custom_call.1']
    #allocation5 [shape = 's32[1]{0}', space=sflag, size = 0x4, scoped, tag = 'scoped memory for tpu_custom_call.1']
    #allocation6 [shape = 'u8[1024]{0}', space=vmem, size = 0x400, scoped, tag = 'output window, operand 0, single buffered']
    %6 = vsyncpa [#allocation4], 0
    %7 = vsyncpa [#allocation5], 0
    // Predicated region
    $region2: #{tpu_custom_call.1} parent=1 // pred_check
      _
    $region3: #{tpu_custom_call.1} parent=1 // pred_check_branch
      %9 = sbr.rel (0) target = $region5
    $region4: #{tpu_custom_call.1} parent=1 // pred_region
      %s11 = ssub.s32 256, 256
      %12 = vsyncadd [#allocation4], %s11
      %s13 = sshll.u32 [#allocation3], 4
      %s14 = int_to_ptr.vmem [resolvable:$true] %s13
      %19 = dma.hbm_to_vmem [thread:$0]  %s0, 256, %s14, [#allocation4], 128, 128, 8
    $region5: #{tpu_custom_call.1} parent=1 // pred_fallthru
      _
    // Predicated region
    $region6: #{tpu_custom_call.1} parent=1 // pred_check
      _
    $region7: #{tpu_custom_call.1} parent=1 // pred_check_branch
      %21 = sbr.rel (0) target = $region9
    $region8: #{tpu_custom_call.1} parent=1 // pred_region
      %22 = dma.done [#allocation4], 256
    $region9: #{tpu_custom_call.1} parent=1 // pred_fallthru
      _
    %p23 = scmp.eq.s32.totalorder 0, 0
    // Predicated region
    $region10: #{tpu_custom_call.1} parent=1 // pred_check
      %p24 = pneg %p23
    $region11: #{tpu_custom_call.1} parent=1 // pred_check_branch
      %26 = sbr.rel (%p24) target = $region13
    $region12: #{tpu_custom_call.1} parent=1 // pred_region
      %vm27 = vcmask 25600
      %28 = vst.msk [vmem:[#allocation2] sm:$0x3] %vm27, 0.0
    $region13: #{tpu_custom_call.1} parent=1 // pred_fallthru
      _
    %v29 = vld [vmem:[#allocation3] sm:$0xff]
    %v30 = vld [vmem:[#allocation3 + $0x8] sm:$0xff]
    %v31 = vmax.f32 %v29, 1e-06
    %v32 = vmax.f32 %v30, 1e-06
    %v33 = vmul.f32 %v31, %v31
    %v34 = vmul.f32 %v32, %v32
    %v35 = vmul.f32 %v33, %v31
    %v36 = vmul.f32 %v34, %v32
    %v37 = vld [vmem:[#allocation2] sm:$0x3]
    %v40 = vcombine.high %v35, %v35
    %v41 = vcombine.high %v36, %v36
    %vm44 = vcmask 1043456
    %v45 = vsel %vm44, %v35, 0.0
    %v46 = vsel %vm44, %v40, 0.0
    %v47 = vadd.f32 %v45, %v46
    %48 = vadd.xlane.f32.xlu0 %v47
    %v49 = vpop.xlane.xlu0 %48
    %v50 = vsel %vm44, %v36, 0.0
    %v51 = vsel %vm44, %v41, 0.0
    %v52 = vadd.f32 %v50, %v51
    %53 = vadd.xlane.f32.xlu0 %v52
    %v54 = vpop.xlane.xlu0 %53
    %v57 = vlaneseq
    %v58 = vand.u32 %v57, 127
    %v59 = vlaneseq
    %v60 = vshrl.u32 %v59, 7
    %v61 = vsub.s32 %v58, %v60
    %v62 = vrot.slane %v49, %v61
    %v63 = vlaneseq
    %v64 = vshrl.u32 %v63, 7
    %v65 = vsub.s32 %v58, %v64
    %v66 = vrot.slane %v54, %v65
    %vm67 = vcmask 1041409
    %v68 = vsel %vm67, %v66, %v62
    %v70 = vadd.f32 %v37, %v68
    %vm71 = vcmask 25600
    %72 = vst.msk [vmem:[#allocation2] sm:$0x3] %vm71, %v70
    // Predicated region
    $region14: #{tpu_custom_call.1} parent=1 // pred_check
      %p73 = pneg %p23
    $region15: #{tpu_custom_call.1} parent=1 // pred_check_branch
      %75 = sbr.rel (%p73) target = $region17
    $region16: #{tpu_custom_call.1} parent=1 // pred_region
      %v76 = vld [vmem:[#allocation2] sm:$0x3]
      %v77 = vmul.f32 %v76, 0.00390625
      %v78 = vlog2.pop %v77
      %v79 = vmul.f32 %v78, 0.6931472
      %v80 = vmul.f32 %v79, 0.33333334
      %v81 = vmul.f32 %v80, 1.442695
      %v82 = vpow.pop %v81
      %83 = vst.msk [vmem:[#allocation6] sm:$0x3] %vm71, %v82
    $region17: #{tpu_custom_call.1} parent=1 // pred_fallthru
      _
    // Predicated region
    $region18: #{tpu_custom_call.1} parent=1 // pred_check
      _
    $region19: #{tpu_custom_call.1} parent=1 // pred_check_branch
      %85 = sbr.rel (0) target = $region21
    $region20: #{tpu_custom_call.1} parent=1 // pred_region
      %s87 = ssub.s32 32, 32
      %88 = vsyncadd [#allocation5], %s87
      %s90 = sshll.u32 [#allocation6], 4
      %s91 = int_to_ptr.vmem [resolvable:$true] %s90
      %93 = dma.vmem_to_hbm [thread:$0]  %s91, 32, %s1, [#allocation5]
    $region21: #{tpu_custom_call.1} parent=1 // pred_fallthru
      _
    // Predicated region
    $region22: #{tpu_custom_call.1} parent=1 // pred_check
      _
    $region23: #{tpu_custom_call.1} parent=1 // pred_check_branch
      %95 = sbr.rel (0) target = $region25
    $region24: #{tpu_custom_call.1} parent=1 // pred_region
      %96 = dma.done [#allocation5], 32
    $region25: #{tpu_custom_call.1} parent=1 // pred_fallthru
      _
    %97 = vsyncpa [#allocation4], 1
    %98 = vsyncpa [#allocation5], 1

</llo_original>
